<compile_context>
chip_gen: v6e
topology: v6e:2x2x1
jax: 0.10.0
libtpu: 0.0.40
codegen_flags: <defaults>
</compile_context>

<pallas_src>
import functools

import jax
import jax.numpy as jnp
from jax import lax
from jax.experimental import pallas as pl
from jax.experimental.pallas import tpu as pltpu

LANES = 128
MAX_BLOCK_ROWS = 1024  # multiple of 8; (1024,128) f32 = 512 KiB per input tile


def _partial_loss_kernel(o_ref, t_ref, out_ref, *, block_rows, n_elems, has_tail):
    i = pl.program_id(0)

    o = o_ref[...].astype(jnp.float32)
    t = t_ref[...].astype(jnp.float32)

    # PyTorch BCELoss clamps each log term at -100 (supports soft targets).
    log_o = jnp.maximum(jnp.log(o), -100.0)
    log_1mo = jnp.maximum(jnp.log(1.0 - o), -100.0)
    # t*log(o) + (1-t)*log(1-o)  ==  log(1-o) + t*(log(o) - log(1-o))
    bce_pos = log_1mo + t * (log_o - log_1mo)
    mism = jnp.logical_and(t == 1.0, o < 0.5)

    if not has_tail:
        # Every element of every block is valid: unmasked fast path only.
        out_ref[0, 0] = -jnp.sum(bce_pos)
        out_ref[0, 1] = jnp.sum(mism.astype(jnp.float32))
    else:
        last = pl.num_programs(0) - 1

        @pl.when(i != last)
        def _():
            # Full blocks: no masking work at all.
            out_ref[0, 0] = -jnp.sum(bce_pos)
            out_ref[0, 1] = jnp.sum(mism.astype(jnp.float32))

        @pl.when(i == last)
        def _():
            # Only the last block contains lane padding and/or garbage rows from a
            # partial Pallas block -> mask via flat element index vs n_elems.
            row = lax.broadcasted_iota(jnp.int32, (block_rows, LANES), 0)
            lane = lax.broadcasted_iota(jnp.int32, (block_rows, LANES), 1)
            flat_idx = (i * block_rows + row) * LANES + lane
            valid = flat_idx < n_elems
            out_ref[0, 0] = -jnp.sum(jnp.where(valid, bce_pos, 0.0))
            out_ref[0, 1] = jnp.sum(
                jnp.where(jnp.logical_and(valid, mism), 1.0, 0.0)
            )


def custom_loss(outputs, targets, penalty=10.0):
    """Pallas implementation of CustomLoss.forward (nn.BCELoss mean reduction)."""
    assert outputs.shape == targets.shape
    n_elems = outputs.size

    o_flat = outputs.reshape(-1)
    t_flat = targets.reshape(-1)

    # Only pad if n_elems is not a multiple of 128 (at most 127 elems); the padded
    # tail is masked inside the kernel, so pad values are irrelevant.
    rem = n_elems % LANES
    if rem:
        pad = LANES - rem
        o_flat = jnp.pad(o_flat, (0, pad))
        t_flat = jnp.pad(t_flat, (0, pad))

    rows = o_flat.shape[0] // LANES
    o2d = o_flat.reshape(rows, LANES)
    t2d = t_flat.reshape(rows, LANES)

    if rows <= MAX_BLOCK_ROWS:
        block_rows = rows            # single grid step, whole slab as one block
    else:
        block_rows = MAX_BLOCK_ROWS  # multiple of 8; partial last block is masked
    num_blocks = pl.cdiv(rows, block_rows)

    # Does the last block contain any invalid elements (lane padding or rows of a
    # partial Pallas block)?  Static -> masking code is only compiled when needed.
    has_tail = (num_blocks * block_rows * LANES) != n_elems

    kernel = functools.partial(
        _partial_loss_kernel,
        block_rows=block_rows,
        n_elems=n_elems,
        has_tail=has_tail,
    )

    partials = pl.pallas_call(
        kernel,
        out_shape=jax.ShapeDtypeStruct((num_blocks, 2), jnp.float32),
        grid_spec=pltpu.PrefetchScalarGridSpec(
            num_scalar_prefetch=0,
            grid=(num_blocks,),
            in_specs=[
                pl.BlockSpec((block_rows, LANES), lambda i: (i, 0)),
                pl.BlockSpec((block_rows, LANES), lambda i: (i, 0)),
            ],
            out_specs=pl.BlockSpec(
                (1, 2), lambda i: (i, 0), memory_space=pltpu.SMEM
            ),
        ),
        compiler_params=pltpu.CompilerParams(
            dimension_semantics=("parallel",)
        ),
    )(o2d, t2d)

    bce_sum = jnp.sum(partials[:, 0])
    mismatch_cnt = jnp.sum(partials[:, 1])
    return bce_sum / jnp.float32(n_elems) + mismatch_cnt * jnp.float32(penalty)


def _reference(outputs, targets, penalty=10.0):
    o = outputs.astype(jnp.float32)
    t = targets.astype(jnp.float32)
    log_o = jnp.maximum(jnp.log(o), -100.0)
    log_1mo = jnp.maximum(jnp.log(1.0 - o), -100.0)
    bce = jnp.mean(-(t * log_o + (1.0 - t) * log_1mo))
    cnt = jnp.sum((t == 1.0) & (o < 0.5))
    return bce + cnt * penalty


if __name__ == "__main__":
    key = jax.random.PRNGKey(0)
    k1, k2 = jax.random.split(key)

    # Shapes consistent with a small CNN output: (batch=2, channels=4, H=16, W=16)
    shape = (2, 4, 16, 16)
    logits = jax.random.normal(k1, shape, dtype=jnp.float32)
    outputs = jax.nn.sigmoid(logits)                       # probabilities in (0,1)
    targets = jax.random.bernoulli(k2, 0.5, shape).astype(jnp.float32)

    loss = custom_loss(outputs, targets, penalty=10.0)
    loss = jax.block_until_ready(loss)

    ref = jax.block_until_ready(_reference(outputs, targets, penalty=10.0))
    assert jnp.allclose(loss, ref, rtol=1e-5, atol=1e-5), (loss, ref)

    print("KERNEL_OK")
</pallas_src>

<mosaic_0001>
module attributes {stable_mosaic.version = 11 : i64} {
  func.func @_partial_loss_kernel(%arg0: i32, %arg1: memref<16x128xf32, #tpu.memory_space<vmem>>, %arg2: memref<16x128xf32, #tpu.memory_space<vmem>>, %arg3: memref<1x2xf32, #tpu.memory_space<smem>>) attributes {dimension_semantics = [#tpu.dimension_semantics<parallel>], iteration_bounds = array<i64: 1>, scalar_prefetch = 0 : i64, scratch_operands = 0 : i64, tpu.core_type = #tpu.core_type<tc>, window_params = [{transform_indices = @transform_0, window_bounds = array<i64: 16, 128>}, {transform_indices = @transform_1, window_bounds = array<i64: 16, 128>}, {transform_indices = @transform_2, window_bounds = array<i64: 1, 2>}]} {
    %c0 = arith.constant 0 : index
    %c0_0 = arith.constant 0 : index
    %0 = vector.load %arg1[%c0, %c0_0] : memref<16x128xf32, #tpu.memory_space<vmem>>, vector<16x128xf32>
    %c0_1 = arith.constant 0 : index
    %c0_2 = arith.constant 0 : index
    %1 = vector.load %arg2[%c0_1, %c0_2] : memref<16x128xf32, #tpu.memory_space<vmem>>, vector<16x128xf32>
    %2 = math.log %0 : vector<16x128xf32>
    %cst = arith.constant -1.000000e+02 : f32
    %3 = vector.broadcast %cst : f32 to vector<16x128xf32>
    %4 = arith.maximumf %2, %3 : vector<16x128xf32>
    %cst_3 = arith.constant 1.000000e+00 : f32
    %5 = vector.broadcast %cst_3 : f32 to vector<16x128xf32>
    %6 = arith.subf %5, %0 : vector<16x128xf32>
    %7 = math.log %6 : vector<16x128xf32>
    %cst_4 = arith.constant -1.000000e+02 : f32
    %8 = vector.broadcast %cst_4 : f32 to vector<16x128xf32>
    %9 = arith.maximumf %7, %8 : vector<16x128xf32>
    %10 = arith.subf %4, %9 : vector<16x128xf32>
    %11 = arith.mulf %1, %10 : vector<16x128xf32>
    %12 = arith.addf %9, %11 : vector<16x128xf32>
    %cst_5 = arith.constant 1.000000e+00 : f32
    %13 = vector.broadcast %cst_5 : f32 to vector<16x128xf32>
    %14 = arith.cmpf oeq, %1, %13 : vector<16x128xf32>
    %cst_6 = arith.constant 5.000000e-01 : f32
    %15 = vector.broadcast %cst_6 : f32 to vector<16x128xf32>
    %16 = arith.cmpf olt, %0, %15 : vector<16x128xf32>
    %17 = arith.andi %14, %16 : vector<16x128xi1>
    %18 = vector.shape_cast %12 : vector<16x128xf32> to vector<1x16x128xf32>
    %cst_7 = arith.constant dense<0.000000e+00> : vector<1xf32>
    %19 = vector.multi_reduction <add>, %18, %cst_7 [1, 2] : vector<1x16x128xf32> to vector<1xf32>
    %20 = vector.shape_cast %19 : vector<1xf32> to vector<1x1x1xf32>
    %21 = vector.extract %20[0, 0, 0] : f32 from vector<1x1x1xf32>
    %cst_8 = arith.constant 0.000000e+00 : f32
    %22 = arith.subf %cst_8, %21 : f32
    %c0_9 = arith.constant 0 : index
    %c0_10 = arith.constant 0 : index
    %23 = memref.load %arg3[%c0_9, %c0_10] : memref<1x2xf32, #tpu.memory_space<smem>>
    memref.store %22, %arg3[%c0_9, %c0_10] : memref<1x2xf32, #tpu.memory_space<smem>>
    %24 = arith.extui %17 : vector<16x128xi1> to vector<16x128xi32>
    %25 = arith.sitofp %24 : vector<16x128xi32> to vector<16x128xf32>
    %26 = vector.shape_cast %25 : vector<16x128xf32> to vector<1x16x128xf32>
    %cst_11 = arith.constant dense<0.000000e+00> : vector<1xf32>
    %27 = vector.multi_reduction <add>, %26, %cst_11 [1, 2] : vector<1x16x128xf32> to vector<1xf32>
    %28 = vector.shape_cast %27 : vector<1xf32> to vector<1x1x1xf32>
    %29 = vector.extract %28[0, 0, 0] : f32 from vector<1x1x1xf32>
    %c0_12 = arith.constant 0 : index
    %c1 = arith.constant 1 : index
    %30 = memref.load %arg3[%c0_12, %c1] : memref<1x2xf32, #tpu.memory_space<smem>>
    memref.store %29, %arg3[%c0_12, %c1] : memref<1x2xf32, #tpu.memory_space<smem>>
    return
  }
  func.func @transform_0(%arg0: i32) -> (i32, i32) {
    %c0_i32 = arith.constant 0 : i32
    %c0_i32_0 = arith.constant 0 : i32
    return %arg0, %c0_i32 : i32, i32
  }
  func.func @transform_1(%arg0: i32) -> (i32, i32) {
    %c0_i32 = arith.constant 0 : i32
    %c0_i32_0 = arith.constant 0 : i32
    return %arg0, %c0_i32 : i32, i32
  }
  func.func @transform_2(%arg0: i32) -> (i32, i32) {
    %c0_i32 = arith.constant 0 : i32
    %c0_i32_0 = arith.constant 0 : i32
    return %arg0, %c0_i32 : i32, i32
  }
}

</mosaic_0001>

<llo_original>
// kernel: tpu_custom_call.1
$region0: #{tpu_custom_call.1}
  #allocation0 [shape = 'u32[]', space=smem, size = 0x4, offset = 0x4, fixed_abs, tag = 'smem constant byte address 0x4 - core index']
  #allocation1 [shape = 'u32[144,128]{1,0:T(1,128)}', space=vmem, size = 0x12000, scoped, tag = 'internal scratch']
  %s0 = inlined_call_operand.hbm [shape: f32[16,128], index: 0, kind: input, shape index: {}]
  %s1 = inlined_call_operand.hbm [shape: f32[16,128], index: 1, kind: input, shape index: {}]
  %s2 = inlined_call_operand.hbm [shape: f32[1,2], index: 2, kind: output, shape index: {}]
  %s3 = sld [smem:[#allocation0]]
  $region26: #{tpu_custom_call.1} parent=0
    _
  %s5 = ssub.s32 1, %s3
  %s6 = scalar_select 0, %s5, %s3
  $region1: #{tpu_custom_call.1} parent=0
    #allocation2 [shape = 'u8[8192]{0}', space=vmem, size = 0x2000, scoped, tag = 'input window, operand 0, single buffered']
    #allocation3 [shape = 's32[1]{0}', space=sflag, size = 0x4, scoped, tag = 'scoped memory for tpu_custom_call.1']
    #allocation4 [shape = 's32[1]{0}', space=sflag, size = 0x4, scoped, tag = 'scoped memory for tpu_custom_call.1']
    #allocation5 [shape = 'u8[8192]{0}', space=vmem, size = 0x2000, scoped, tag = 'input window, operand 1, single buffered']
    #allocation6 [shape = 's32[1]{0}', space=sflag, size = 0x4, scoped, tag = 'scoped memory for tpu_custom_call.1']
    #allocation7 [shape = 'u8[512]{0}', space=smem, size = 0x200, scoped, tag = 'output window, operand 0, single buffered']
    %7 = vsyncpa [#allocation3], 0
    %8 = vsyncpa [#allocation6], 0
    %9 = vsyncpa [#allocation4], 0
    // Predicated region
    $region2: #{tpu_custom_call.1} parent=1 // pred_check
      _
    $region3: #{tpu_custom_call.1} parent=1 // pred_check_branch
      %11 = sbr.rel (0) target = $region5
    $region4: #{tpu_custom_call.1} parent=1 // pred_region
      %s13 = ssub.s32 256, 256
      %14 = vsyncadd [#allocation3], %s13
      %s15 = sshll.u32 [#allocation2], 4
      %s16 = int_to_ptr.vmem [resolvable:$true] %s15
      %21 = dma.hbm_to_vmem [thread:$0]  %s0, 256, %s16, [#allocation3], 128, 128, 8
    $region5: #{tpu_custom_call.1} parent=1 // pred_fallthru
      _
    // Predicated region
    $region6: #{tpu_custom_call.1} parent=1 // pred_check
      _
    $region7: #{tpu_custom_call.1} parent=1 // pred_check_branch
      %23 = sbr.rel (0) target = $region9
    $region8: #{tpu_custom_call.1} parent=1 // pred_region
      %s25 = ssub.s32 256, 256
      %26 = vsyncadd [#allocation6], %s25
      %s27 = sshll.u32 [#allocation5], 4
      %s28 = int_to_ptr.vmem [resolvable:$true] %s27
      %33 = dma.hbm_to_vmem [thread:$0]  %s1, 256, %s28, [#allocation6], 128, 128, 8
    $region9: #{tpu_custom_call.1} parent=1 // pred_fallthru
      _
    // Predicated region
    $region10: #{tpu_custom_call.1} parent=1 // pred_check
      _
    $region11: #{tpu_custom_call.1} parent=1 // pred_check_branch
      %35 = sbr.rel (0) target = $region13
    $region12: #{tpu_custom_call.1} parent=1 // pred_region
      %36 = dma.done [#allocation3], 256
    $region13: #{tpu_custom_call.1} parent=1 // pred_fallthru
      _
    // Predicated region
    $region14: #{tpu_custom_call.1} parent=1 // pred_check
      _
    $region15: #{tpu_custom_call.1} parent=1 // pred_check_branch
      %38 = sbr.rel (0) target = $region17
    $region16: #{tpu_custom_call.1} parent=1 // pred_region
      %39 = dma.done [#allocation6], 256
    $region17: #{tpu_custom_call.1} parent=1 // pred_fallthru
      _
    %v40 = vld [vmem:[#allocation2] sm:$0xff]
    %v41 = vld [vmem:[#allocation2 + $0x8] sm:$0xff]
    %v42 = vld [vmem:[#allocation5] sm:$0xff]
    %v43 = vld [vmem:[#allocation5 + $0x8] sm:$0xff]
    %v44 = vlog2.pop %v40
    %v45 = vmul.f32 %v44, 0.6931472
    %v46 = vlog2.pop %v41
    %v47 = vmul.f32 %v46, 0.6931472
    %v48 = vmax.f32 %v45, -100.0
    %v49 = vmax.f32 %v47, -100.0
    %v50 = vsub.f32 1.0, %v40
    %v51 = vsub.f32 1.0, %v41
    %v52 = vlog2.pop %v50
    %v53 = vmul.f32 %v52, 0.6931472
    %v54 = vlog2.pop %v51
    %v55 = vmul.f32 %v54, 0.6931472
    %v56 = vmax.f32 %v53, -100.0
    %v57 = vmax.f32 %v55, -100.0
    %v58 = vsub.f32 %v48, %v56
    %v59 = vsub.f32 %v49, %v57
    %v60 = vmul.f32 %v42, %v58
    %v61 = vmul.f32 %v43, %v59
    %v62 = vadd.f32 %v56, %v60
    %v63 = vadd.f32 %v57, %v61
    %vm64 = vcmp.eq.f32.partialorder %v42, 1.0
    %vm65 = vcmp.eq.f32.partialorder %v43, 1.0
    %vm66 = vcmp.lt.f32.partialorder %v40, 0.5
    %vm67 = vcmp.lt.f32.partialorder %v41, 0.5
    %vm68 = vmand %vm64, %vm66
    %vm69 = vmand %vm65, %vm67
    %v70 = vadd.f32 %v62, %v63
    %71 = vadd.xlane.f32.xlu0 %v70
    %v72 = vpop.xlane.xlu0 %71
    %v73 = vrot.slane %v72, 4
    %v74 = vadd.f32 %v72, %v73
    %v75 = vrot.slane %v74, 2
    %v76 = vadd.f32 %v74, %v75
    %v77 = vrot.slane %v76, 1
    %v78 = vadd.f32 %v76, %v77
    %s79 = vtos %v78
    %s80 = ssub.f32 0.0, %s79
    %s81 = scalar_lea.smem [#allocation7], 0
    %82 = sst [smem:[%s81]] %s80
    %v83 = vsel %vm68, 1, 0
    %v84 = vsel %vm69, 1, 0
    %v85 = vcvt.s32.f32 %v83
    %v86 = vcvt.s32.f32 %v84
    %v87 = vadd.f32 %v85, %v86
    %88 = vadd.xlane.f32.xlu0 %v87
    %v89 = vpop.xlane.xlu0 %88
    %v90 = vrot.slane %v89, 4
    %v91 = vadd.f32 %v89, %v90
    %v92 = vrot.slane %v91, 2
    %v93 = vadd.f32 %v91, %v92
    %v94 = vrot.slane %v93, 1
    %v95 = vadd.f32 %v93, %v94
    %s96 = vtos %v95
    %s97 = scalar_lea.smem [#allocation7], 1
    %98 = sst [smem:[%s97]] %s96
    // Predicated region
    $region18: #{tpu_custom_call.1} parent=1 // pred_check
      _
    $region19: #{tpu_custom_call.1} parent=1 // pred_check_branch
      %100 = sbr.rel (0) target = $region21
    $region20: #{tpu_custom_call.1} parent=1 // pred_region
      %s102 = ssub.s32 16, 16
      %103 = vsyncadd [#allocation4], %s102
      %106 = dma.smem_to_hbm [#allocation7], 16, %s2, [#allocation4]
    $region21: #{tpu_custom_call.1} parent=1 // pred_fallthru
      _
    // Predicated region
    $region22: #{tpu_custom_call.1} parent=1 // pred_check
      _
    $region23: #{tpu_custom_call.1} parent=1 // pred_check_branch
      %108 = sbr.rel (0) target = $region25
    $region24: #{tpu_custom_call.1} parent=1 // pred_region
      %109 = dma.done [#allocation4], 16
    $region25: #{tpu_custom_call.1} parent=1 // pred_fallthru
      _
    %110 = sfence
    %111 = vsyncpa [#allocation3], 1
    %112 = vsyncpa [#allocation6], 1
    %113 = vsyncpa [#allocation4], 1

</llo_original>
